<compile_context>
chip_gen: v7x
topology: tpu7x:2x2x1
jax: 0.10.0
libtpu: 0.0.40
codegen_flags: <defaults>
</compile_context>

<pallas_src>
import jax
import jax.numpy as jnp
from jax.experimental import pallas as pl
from jax.experimental.pallas import tpu as pltpu


# ----------------------------------------------------------------------------
# Kernels
# ----------------------------------------------------------------------------

def _projecter_kernel_fused(x_ref, wt_ref, b_ref, o_ref):
    # Collapsed-K path: x_ref [tb, H], wt_ref [H, tn], b_ref [1, tn], o_ref [tb, tn].
    y = jnp.dot(x_ref[...], wt_ref[...], preferred_element_type=jnp.float32)
    y = y + b_ref[...].astype(jnp.float32)
    o_ref[...] = jnp.tanh(y).astype(o_ref.dtype)


def _projecter_kernel_kacc_inplace(x_ref, wt_ref, b_ref, o_ref):
    # K-tiled path, f32 output: accumulate directly into the resident output block.
    k = pl.program_id(2)

    @pl.when(k == 0)
    def _():
        o_ref[...] = jnp.broadcast_to(
            b_ref[...].astype(jnp.float32), o_ref.shape)

    o_ref[...] += jnp.dot(
        x_ref[...], wt_ref[...], preferred_element_type=jnp.float32)

    @pl.when(k == pl.num_programs(2) - 1)
    def _():
        o_ref[...] = jnp.tanh(o_ref[...])


def _projecter_kernel_kacc_scratch(x_ref, wt_ref, b_ref, o_ref, acc_ref):
    # K-tiled path, non-f32 output: f32 scratch accumulator, cast once at the end.
    k = pl.program_id(2)

    @pl.when(k == 0)
    def _():
        acc_ref[...] = jnp.broadcast_to(
            b_ref[...].astype(jnp.float32), acc_ref.shape)

    acc_ref[...] += jnp.dot(
        x_ref[...], wt_ref[...], preferred_element_type=jnp.float32)

    @pl.when(k == pl.num_programs(2) - 1)
    def _():
        o_ref[...] = jnp.tanh(acc_ref[...]).astype(o_ref.dtype)


# ----------------------------------------------------------------------------
# Parameter preparation (done once at init, NOT per forward call)
# ----------------------------------------------------------------------------

def prepare_projecter_params(weight, bias, mxu_dtype=None):
    """Transpose (and optionally cast) the nn.Linear weight once.

    weight: [H_out, H_in] (PyTorch nn.Linear layout) -> returns wt [H_in, H_out].
    `mxu_dtype` (e.g. jnp.bfloat16) stores the weight in the MXU fast-path dtype;
    valid on v5e/v6e/v7x (accumulation and the tanh epilogue stay f32).
    The bias stays in its original (f32) dtype.
    """
    wt = jnp.asarray(weight).T
    if mxu_dtype is not None:
        wt = wt.astype(mxu_dtype)
    bias2d = jnp.asarray(bias).reshape(1, -1)
    return wt, bias2d


# ----------------------------------------------------------------------------
# Tile selection
# ----------------------------------------------------------------------------

_TB_CAPS = (2048, 1024, 512, 256, 128, 64, 32, 16, 8)
_TN_CAPS = (2048, 1024, 512, 256, 128)
_TK_CAPS = (2048, 1024, 512, 256, 128)
_XLA_FALLBACK_MACS = 4 * 1024 * 1024  # below this, per-step overhead dominates


def _tpu_vmem_physical_bytes():
    try:
        return int(pltpu.get_tpu_info().vmem_capacity_bytes)
    except Exception:
        return 64 << 20  # conservative (v7x-class) fallback


def _divisor_candidates(dim, caps):
    cands = {dim}  # the full dim always satisfies the (8,128) rule
    for c in caps:
        if c <= dim and dim % c == 0:
            cands.add(c)
    return sorted(cands, reverse=True)


def _tile_vmem_bytes(tb, tn, tk, x_bytes, w_bytes, out_bytes, H):
    total = 2 * tb * tk * x_bytes        # x tile, double-buffered
    total += 2 * tk * tn * w_bytes       # weight tile, double-buffered
    total += 2 * tn * 4                  # bias row (negligible)
    total += 2 * tb * tn * out_bytes     # output tile, double-buffered
    if tk != H and out_bytes != 4:       # K tiled & non-f32 out -> f32 scratch
        total += tb * tn * 4
    return total


def _select_tiles(B, H, x_bytes, w_bytes, out_bytes, budget, prefer_split):
    tb_cands = _divisor_candidates(B, _TB_CAPS)
    tn_cands = _divisor_candidates(H, _TN_CAPS)
    tk_cands = _divisor_candidates(H, _TK_CAPS)
    # Priority: maximize tb (weight re-stream factor B/tb), then tn (activation
    # re-fetch factor H/tn), then tk (K collapse removes the accumulator RMW).
    for tb in tb_cands:
        for tn in tn_cands:
            for tk in tk_cands:
                if _tile_vmem_bytes(tb, tn, tk, x_bytes, w_bytes,
                                    out_bytes, H) <= budget:
                    if prefer_split and (B // tb) * (H // tn) < 2:
                        # 2-TC chips: keep >=2 parallel grid steps (split N).
                        smaller = [c for c in tn_cands if c < tn]
                        if smaller:
                            tn = smaller[0]
                    return tb, tn, tk
    return None  # nothing fits (e.g. prime H) -> caller falls back to XLA


# ----------------------------------------------------------------------------
# Forward
# ----------------------------------------------------------------------------

def projecter_forward(features, wt, bias2d, *, out_dtype=None,
                      block_b=None, block_n=None, block_k=None,
                      use_pallas=None):
    """y = tanh(features @ wt + bias); wt is the pre-transposed [H_in, H_out] weight
    from `prepare_projecter_params` (possibly already cast to bf16)."""
    B, H = features.shape
    assert wt.shape == (H, H)
    assert bias2d.shape == (1, H)
    if out_dtype is None:
        out_dtype = features.dtype
    out_dtype = jnp.dtype(out_dtype)

    # Match activation dtype to the (pre-cast) weight dtype for the MXU.
    if features.dtype != wt.dtype:
        features = features.astype(wt.dtype)

    x_bytes = features.dtype.itemsize
    w_bytes = wt.dtype.itemsize
    out_bytes = out_dtype.itemsize

    def _xla_path():
        y = jnp.dot(features, wt, preferred_element_type=jnp.float32)
        y = y + bias2d.astype(jnp.float32)
        return jnp.tanh(y).astype(out_dtype)

    if use_pallas is None:
        use_pallas = (B * H * H) >= _XLA_FALLBACK_MACS
    if not use_pallas:
        return _xla_path()

    # Generation-aware VMEM budget: ~100 MiB scoped on 128-MiB parts (v5e/v6e),
    # ~48 MiB on 64-MiB parts (v7x).
    phys = _tpu_vmem_physical_bytes()
    if phys >= (128 << 20):
        vmem_limit = 100 << 20
    else:
        vmem_limit = max(32 << 20, (phys * 3) // 4)
    budget = vmem_limit - (8 << 20)

    if block_b is None or block_n is None or block_k is None:
        prefer_split = (phys <= (64 << 20)) and (B * H >= (1 << 19))
        sel = _select_tiles(B, H, x_bytes, w_bytes, out_bytes, budget,
                            prefer_split)
        if sel is None:
            # Non-tileable dims would blow the VMEM budget; use fused XLA instead.
            return _xla_path()
        auto_tb, auto_tn, auto_tk = sel
        block_b = auto_tb if block_b is None else block_b
        block_n = auto_tn if block_n is None else block_n
        block_k = auto_tk if block_k is None else block_k

    assert B % block_b == 0 and H % block_n == 0 and H % block_k == 0

    gb, gn, gk = B // block_b, H // block_n, H // block_k
    k_collapsed = (block_k == H)

    if k_collapsed:
        # Single fused dot + bias + tanh; no accumulator, no output revisits.
        return pl.pallas_call(
            _projecter_kernel_fused,
            out_shape=jax.ShapeDtypeStruct((B, H), out_dtype),
            grid_spec=pltpu.PrefetchScalarGridSpec(
                num_scalar_prefetch=0,
                grid=(gb, gn),
                in_specs=[
                    pl.BlockSpec((block_b, H), lambda i, j: (i, 0)),       # x
                    pl.BlockSpec((H, block_n), lambda i, j: (0, j)),       # W^T
                    pl.BlockSpec((1, block_n), lambda i, j: (0, j)),       # bias
                ],
                out_specs=pl.BlockSpec((block_b, block_n), lambda i, j: (i, j)),
            ),
            compiler_params=pltpu.CompilerParams(
                dimension_semantics=("parallel", "parallel"),
                vmem_limit_bytes=vmem_limit,
            ),
        )(features, wt, bias2d)

    # K-tiled path: resident accumulator across the (innermost, "arbitrary") K axis.
    if out_dtype == jnp.dtype(jnp.float32):
        kernel = _projecter_kernel_kacc_inplace
        scratch = []
    else:
        kernel = _projecter_kernel_kacc_scratch
        scratch = [pltpu.VMEM((block_b, block_n), jnp.float32)]

    return pl.pallas_call(
        kernel,
        out_shape=jax.ShapeDtypeStruct((B, H), out_dtype),
        grid_spec=pltpu.PrefetchScalarGridSpec(
            num_scalar_prefetch=0,
            grid=(gb, gn, gk),
            in_specs=[
                pl.BlockSpec((block_b, block_k), lambda i, j, k: (i, k)),  # x
                pl.BlockSpec((block_k, block_n), lambda i, j, k: (k, j)),  # W^T
                pl.BlockSpec((1, block_n), lambda i, j, k: (0, j)),        # bias
            ],
            out_specs=pl.BlockSpec((block_b, block_n), lambda i, j, k: (i, j)),
            scratch_shapes=scratch,
        ),
        compiler_params=pltpu.CompilerParams(
            dimension_semantics=("parallel", "parallel", "arbitrary"),
            vmem_limit_bytes=vmem_limit,
        ),
    )(features, wt, bias2d)


# ----------------------------------------------------------------------------
# Self-test
# ----------------------------------------------------------------------------

if __name__ == "__main__":
    def make_inputs(key, B, H):
        k_x, k_w, k_b = jax.random.split(key, 3)
        bound = 1.0 / (H ** 0.5)
        features = jax.random.normal(k_x, (B, H), dtype=jnp.float32)
        weight = jax.random.uniform(k_w, (H, H), dtype=jnp.float32,
                                    minval=-bound, maxval=bound)
        bias = jax.random.uniform(k_b, (H,), dtype=jnp.float32,
                                  minval=-bound, maxval=bound)
        return features, weight, bias

    def reference(features, weight, bias):
        y = jax.lax.dot_general(
            features, weight,
            dimension_numbers=(((1,), (1,)), ((), ())),
            precision=jax.lax.Precision.HIGHEST)
        return jnp.tanh(y + bias)

    # 1) Spec shape (batch=8, hidden=32): force the Pallas fused path (grid (1,1)).
    x, w, b = make_inputs(jax.random.PRNGKey(0), 8, 32)
    wt, b2 = prepare_projecter_params(w, b)
    out = jax.block_until_ready(projecter_forward(x, wt, b2, use_pallas=True))
    ref = reference(x, w, b)
    assert out.shape == (8, 32)
    assert jnp.allclose(out, ref, atol=1e-5, rtol=1e-5), "small-shape mismatch"

    # 1b) Auto-dispatch at the toy shape routes to the fused-XLA fast path.
    out_auto = jax.block_until_ready(projecter_forward(x, wt, b2))
    assert jnp.allclose(out_auto, ref, atol=1e-5, rtol=1e-5), "fallback mismatch"

    # 2) Forced small tiles exercise the K-tiled in-place f32 accumulator (grid 2x3x3).
    x2, w2, bias2 = make_inputs(jax.random.PRNGKey(1), 64, 384)
    wt2, b2d2 = prepare_projecter_params(w2, bias2)
    out2 = jax.block_until_ready(projecter_forward(
        x2, wt2, b2d2, use_pallas=True, block_b=32, block_n=128, block_k=128))
    ref2 = reference(x2, w2, bias2)
    assert jnp.allclose(out2, ref2, atol=1e-4, rtol=1e-4), "K-tiled path mismatch"

    # 3) bf16 weights prepared once (MXU fast path on v5e/v6e/v7x), auto tiles
    #    -> fused kernel, f32 accumulation + f32 tanh epilogue, f32 output.
    wt2_bf16, b2d2_f32 = prepare_projecter_params(w2, bias2,
                                                  mxu_dtype=jnp.bfloat16)
    out3 = jax.block_until_ready(
        projecter_forward(x2, wt2_bf16, b2d2_f32, use_pallas=True))
    assert jnp.allclose(out3, ref2, atol=5e-2, rtol=5e-2), "bf16 fused mismatch"

    # 4) bf16 activations + bf16 output + forced K tiling -> scratch-accumulator kernel.
    out4 = jax.block_until_ready(projecter_forward(
        x2.astype(jnp.bfloat16), wt2_bf16, b2d2_f32, use_pallas=True,
        block_b=32, block_n=128, block_k=128))
    assert jnp.allclose(out4.astype(jnp.float32), ref2,
                        atol=5e-2, rtol=5e-2), "bf16 scratch-acc mismatch"

    print("KERNEL_OK")
</pallas_src>

<mosaic_0001>
module attributes {stable_mosaic.version = 11 : i64} {
  func.func @_projecter_kernel_fused(%arg0: i32, %arg1: i32, %arg2: memref<8x32xf32, #tpu.memory_space<vmem>>, %arg3: memref<32x32xf32, #tpu.memory_space<vmem>>, %arg4: memref<1x32xf32, #tpu.memory_space<vmem>>, %arg5: memref<8x32xf32, #tpu.memory_space<vmem>>) attributes {dimension_semantics = [#tpu.dimension_semantics<parallel>, #tpu.dimension_semantics<parallel>], iteration_bounds = array<i64: 1, 1>, scalar_prefetch = 0 : i64, scratch_operands = 0 : i64, tpu.core_type = #tpu.core_type<tc>, window_params = [{transform_indices = @transform_0, window_bounds = array<i64: 8, 32>}, {transform_indices = @transform_1, window_bounds = array<i64: 32, 32>}, {transform_indices = @transform_2, window_bounds = array<i64: 1, 32>}, {transform_indices = @transform_3, window_bounds = array<i64: 8, 32>}]} {
    %c0 = arith.constant 0 : index
    %c0_0 = arith.constant 0 : index
    %0 = vector.load %arg2[%c0, %c0_0] : memref<8x32xf32, #tpu.memory_space<vmem>>, vector<8x32xf32>
    %c0_1 = arith.constant 0 : index
    %c0_2 = arith.constant 0 : index
    %1 = vector.load %arg3[%c0_1, %c0_2] : memref<32x32xf32, #tpu.memory_space<vmem>>, vector<32x32xf32>
    %cst = arith.constant dense<0.000000e+00> : vector<8x32xf32>
    %2 = tpu.matmul %0, %1, %cst {dimension_numbers = #tpu.dot_dimension_numbers<[1], [0], [0], [1], [0, 0, 1, 1], [], []>} : vector<8x32xf32>, vector<32x32xf32>, vector<8x32xf32> -> vector<8x32xf32>
    %c0_3 = arith.constant 0 : index
    %c0_4 = arith.constant 0 : index
    %3 = vector.load %arg4[%c0_3, %c0_4] : memref<1x32xf32, #tpu.memory_space<vmem>>, vector<1x32xf32>
    %4 = vector.broadcast %3 : vector<1x32xf32> to vector<8x32xf32>
    %5 = arith.addf %2, %4 : vector<8x32xf32>
    %6 = math.tanh %5 : vector<8x32xf32>
    %c0_5 = arith.constant 0 : index
    %c0_6 = arith.constant 0 : index
    %7 = vector.load %arg5[%c0_5, %c0_6] : memref<8x32xf32, #tpu.memory_space<vmem>>, vector<8x32xf32>
    tpu.vector_store %arg5[%c0_5, %c0_6], %6 {strides = array<i32>} : memref<8x32xf32, #tpu.memory_space<vmem>>, vector<8x32xf32>,
    return
  }
  func.func @transform_0(%arg0: i32, %arg1: i32) -> (i32, i32) {
    %c0_i32 = arith.constant 0 : i32
    %c0_i32_0 = arith.constant 0 : i32
    return %arg0, %c0_i32 : i32, i32
  }
  func.func @transform_1(%arg0: i32, %arg1: i32) -> (i32, i32) {
    %c0_i32 = arith.constant 0 : i32
    %c0_i32_0 = arith.constant 0 : i32
    return %c0_i32, %arg1 : i32, i32
  }
  func.func @transform_2(%arg0: i32, %arg1: i32) -> (i32, i32) {
    %c0_i32 = arith.constant 0 : i32
    %c0_i32_0 = arith.constant 0 : i32
    return %c0_i32, %arg1 : i32, i32
  }
  func.func @transform_3(%arg0: i32, %arg1: i32) -> (i32, i32) {
    %c0_i32 = arith.constant 0 : i32
    return %arg0, %arg1 : i32, i32
  }
}

</mosaic_0001>

<llo_original>
// kernel: tpu_custom_call.1
$region0: #{tpu_custom_call.1}
  #allocation0 [shape = 'u32[]', space=smem, size = 0x4, offset = 0x4, fixed_abs, tag = 'smem constant byte address 0x4 - core index']
  #allocation1 [shape = 'u32[144,128]{1,0:T(1,128)}', space=vmem, size = 0x12000, scoped, tag = 'internal scratch']
  %s0 = inlined_call_operand.hbm [shape: f32[8,32], index: 0, kind: input, shape index: {}]
  %s1 = inlined_call_operand.hbm [shape: f32[32,32], index: 1, kind: input, shape index: {}]
  %s2 = inlined_call_operand.vmem [shape: f32[1,32], index: 2, kind: input, shape index: {}]
  %s3 = inlined_call_operand.hbm [shape: f32[8,32], index: 3, kind: output, shape index: {}]
  %s4 = sld [smem:[#allocation0]]
  $region30: #{tpu_custom_call.1} parent=0
    _
  %s6 = ssub.s32 1, %s4
  %s7 = scalar_select 0, %s6, %s4
  $region1: #{tpu_custom_call.1} parent=0
    #allocation2 [shape = 'u8[4096]{0}', space=vmem, size = 0x1000, scoped, tag = 'input window, operand 0, single buffered']
    #allocation3 [shape = 's32[1]{0}', space=sflag, size = 0x4, scoped, tag = 'scoped memory for tpu_custom_call.1']
    #allocation4 [shape = 's32[1]{0}', space=sflag, size = 0x4, scoped, tag = 'scoped memory for tpu_custom_call.1']
    #allocation5 [shape = 'u8[16384]{0}', space=vmem, size = 0x4000, scoped, tag = 'input window, operand 1, single buffered']
    #allocation6 [shape = 's32[1]{0}', space=sflag, size = 0x4, scoped, tag = 'scoped memory for tpu_custom_call.1']
    #allocation7 [shape = 'u8[4096]{0}', space=vmem, size = 0x1000, scoped, tag = 'output window, operand 0, single buffered']
    %8 = vsyncpa [#allocation3], 0
    %9 = vsyncpa [#allocation6], 0
    %10 = vsyncpa [#allocation4], 0
    // Predicated region
    $region2: #{tpu_custom_call.1} parent=1 // pred_check
      _
    $region3: #{tpu_custom_call.1} parent=1 // pred_check_branch
      %12 = sbr.rel (0) target = $region5
    $region4: #{tpu_custom_call.1} parent=1 // pred_region
      %s14 = ssub.s32 128, 128
      %15 = vsyncadd [#allocation3], %s14
      %s17 = sshll.u32 [#allocation2], 4
      %s18 = int_to_ptr.vmem [resolvable:$true] %s17
      %20 = dma.hbm_to_vmem [thread:$0]  %s0, 128, %s18, [#allocation3]
    $region5: #{tpu_custom_call.1} parent=1 // pred_fallthru
      _
    // Predicated region
    $region6: #{tpu_custom_call.1} parent=1 // pred_check
      _
    $region7: #{tpu_custom_call.1} parent=1 // pred_check_branch
      %22 = sbr.rel (0) target = $region9
    $region8: #{tpu_custom_call.1} parent=1 // pred_region
      %s24 = ssub.s32 512, 512
      %25 = vsyncadd [#allocation6], %s24
      %s26 = sshll.u32 [#allocation5], 4
      %s27 = int_to_ptr.vmem [resolvable:$true] %s26
      %32 = dma.hbm_to_vmem [thread:$0]  %s1, 512, %s27, [#allocation6], 128, 128, 8
    $region9: #{tpu_custom_call.1} parent=1 // pred_fallthru
      _
    // Predicated region
    $region10: #{tpu_custom_call.1} parent=1 // pred_check
      _
    $region11: #{tpu_custom_call.1} parent=1 // pred_check_branch
      %34 = sbr.rel (0) target = $region13
    $region12: #{tpu_custom_call.1} parent=1 // pred_region
      _
    $region13: #{tpu_custom_call.1} parent=1 // pred_fallthru
      _
    // Predicated region
    $region14: #{tpu_custom_call.1} parent=1 // pred_check
      _
    $region15: #{tpu_custom_call.1} parent=1 // pred_check_branch
      %36 = sbr.rel (0) target = $region17
    $region16: #{tpu_custom_call.1} parent=1 // pred_region
      %37 = dma.done [#allocation3], 128
    $region17: #{tpu_custom_call.1} parent=1 // pred_fallthru
      _
    // Predicated region
    $region18: #{tpu_custom_call.1} parent=1 // pred_check
      _
    $region19: #{tpu_custom_call.1} parent=1 // pred_check_branch
      %39 = sbr.rel (0) target = $region21
    $region20: #{tpu_custom_call.1} parent=1 // pred_region
      %40 = dma.done [#allocation6], 512
    $region21: #{tpu_custom_call.1} parent=1 // pred_fallthru
      _
    %v41 = vld [vmem:[#allocation2] sm:$0xff]
    %v42 = vld [vmem:[#allocation5] sm:$0xff]
    %v43 = vld [vmem:[#allocation5 + $0x8] sm:$0xff]
    %v44 = vld [vmem:[#allocation5 + $0x10] sm:$0xff]
    %v45 = vld [vmem:[#allocation5 + $0x18] sm:$0xff]
    %v46 = vld [vmem:[%s2] sm:$0x1]
    %v48 = vlaneseq
    %v49 = vshrl.u32 %v48, 7
    %v50 = vsub.s32 0, %v49
    %v51 = vrot.slane %v46, %v50
    %vm53 = vcmask 261120
    %v55 = vsel %vm53, %v41, 0
    %57 = vmatprep.subr.mxu0 0.0
    %58 = vmatpush1.msra.mxu0 %v42
    %59 = vmatprep.subr.mxu0 0.0
    %60 = vmatpush1.msra.mxu0 %v43
    %61 = vmatprep.subr.mxu0 0.0
    %62 = vmatpush1.msra.mxu0 %v44
    %63 = vmatprep.subr.mxu0 0.0
    %64 = vmatpush1.msra.mxu0 %v45
    %65 = vmatprep.subr.mxu0 0.0
    %66 = vmatpush1.msra.mxu0 0.0
    %67 = vmatprep.subr.mxu0 0.0
    %68 = vmatpush1.msra.mxu0 0.0
    %69 = vmatprep.subr.mxu0 0.0
    %70 = vmatpush1.msra.mxu0 0.0
    %71 = vmatprep.subr.mxu0 0.0
    %72 = vmatpush1.msra.mxu0 0.0
    %73 = vmatprep.subr.mxu0 0.0
    %74 = vmatpush1.msra.mxu0 0.0
    %75 = vmatprep.subr.mxu0 0.0
    %76 = vmatpush1.msra.mxu0 0.0
    %77 = vmatprep.subr.mxu0 0.0
    %78 = vmatpush1.msra.mxu0 0.0
    %79 = vmatprep.subr.mxu0 0.0
    %80 = vmatpush1.msra.mxu0 0.0
    %81 = vmatprep.subr.mxu0 0.0
    %82 = vmatpush1.msra.mxu0 0.0
    %83 = vmatprep.subr.mxu0 0.0
    %84 = vmatpush1.msra.mxu0 0.0
    %85 = vmatprep.subr.mxu0 0.0
    %86 = vmatpush1.msra.mxu0 0.0
    %87 = vmatprep.subr.mxu0 0.0
    %88 = vmatpush1.msra.mxu0 0.0
    %89 = vmatprep.subr.mxu0 0.0
    %90 = vmatpush1.msra.mxu0 0.0
    %91 = vmatprep.subr.mxu0 0.0
    %92 = vmatpush1.msra.mxu0 0.0
    %93 = vmatprep.subr.mxu0 0.0
    %94 = vmatpush1.msra.mxu0 0.0
    %95 = vmatprep.subr.mxu0 0.0
    %96 = vmatpush1.msra.mxu0 0.0
    %97 = vmatprep.subr.mxu0 0.0
    %98 = vmatpush1.msra.mxu0 0.0
    %99 = vmatprep.subr.mxu0 0.0
    %100 = vmatpush1.msra.mxu0 0.0
    %101 = vmatprep.subr.mxu0 0.0
    %102 = vmatpush1.msra.mxu0 0.0
    %103 = vmatprep.subr.mxu0 0.0
    %104 = vmatpush1.msra.mxu0 0.0
    %105 = vmatprep.subr.mxu0 0.0
    %106 = vmatpush1.msra.mxu0 0.0
    %107 = vmatprep.subr.mxu0 0.0
    %108 = vmatpush1.msra.mxu0 0.0
    %109 = vmatprep.subr.mxu0 0.0
    %110 = vmatpush1.msra.mxu0 0.0
    %111 = vmatprep.subr.mxu0 0.0
    %112 = vmatpush1.msra.mxu0 0.0
    %113 = vmatprep.subr.mxu0 0.0
    %114 = vmatpush1.msra.mxu0 0.0
    %115 = vmatprep.subr.mxu0 0.0
    %116 = vmatpush1.msra.mxu0 0.0
    %117 = vmatprep.subr.mxu0 0.0
    %118 = vmatpush1.msra.mxu0 0.0
    %119 = vmatprep.subr.mxu0 0.0
    %120 = vmatpush1.msra.mxu0 0.0
    %121 = vmatprep.mubr.f32.mxu0 0.0
    %122 = vmatmul.mubr.f32.gmra.mrb[0].mxu0 %v55
    %v123 = vpop.f32.mrb[0].mxu0
    %v124 = vadd.f32 %v51, %v123
    %v125 = vpop.f32.mrb[0].mxu0
    %126 = vdwg.mxu0
    %v127 = vtanh.pop %v124
    %128 = vst.msk [vmem:[#allocation7] sm:$0xff] %vm53, %v127
    // Predicated region
    $region22: #{tpu_custom_call.1} parent=1 // pred_check
      _
    $region23: #{tpu_custom_call.1} parent=1 // pred_check_branch
      %130 = sbr.rel (0) target = $region25
    $region24: #{tpu_custom_call.1} parent=1 // pred_region
      %s132 = ssub.s32 128, 128
      %133 = vsyncadd [#allocation4], %s132
      %s135 = sshll.u32 [#allocation7], 4
      %s136 = int_to_ptr.vmem [resolvable:$true] %s135
      %138 = dma.vmem_to_hbm [thread:$0]  %s136, 128, %s3, [#allocation4]
    $region25: #{tpu_custom_call.1} parent=1 // pred_fallthru
      _
    // Predicated region
    $region26: #{tpu_custom_call.1} parent=1 // pred_check
      _
    $region27: #{tpu_custom_call.1} parent=1 // pred_check_branch
      %140 = sbr.rel (0) target = $region29
    $region28: #{tpu_custom_call.1} parent=1 // pred_region
      %141 = dma.done [#allocation4], 128
    $region29: #{tpu_custom_call.1} parent=1 // pred_fallthru
      _
    %142 = vsyncpa [#allocation3], 1
    %143 = vsyncpa [#allocation6], 1
    %144 = vsyncpa [#allocation4], 1

</llo_original>
